<compile_context>
chip_gen: v5e
topology: v5e:2x2
jax: 0.10.0
libtpu: 0.0.40
codegen_flags: <defaults>
</compile_context>

<pallas_src>
import functools

import jax
import jax.numpy as jnp
from jax import lax
from jax.experimental import pallas as pl
from jax.experimental.pallas import tpu as pltpu


def _kp_loss_kernel(H, W, feat1_ref, feat2_ref, pk_ref, out_ref):
    """Processes a block of Bb batches.

    feat1_ref, feat2_ref: [Bb, C, H*W]   (channels on sublanes, flat spatial on lanes)
    pk_ref:               [Bb, 8, N]     rows: kp1x, kp1y, kp2x, kp2y, m1, m2, 0, 0
    out_ref:              [1, Bb, 2]     per-batch (loss_sum, valid_count)
    """
    Bb = feat1_ref.shape[0]
    N = pk_ref.shape[2]

    f1 = feat1_ref[...].astype(jnp.float32)   # [Bb, C, HW]
    f2 = feat2_ref[...].astype(jnp.float32)
    pk = pk_ref[...]                          # [Bb, 8, N]

    def bilinear_weights(x, y):
        # x, y: [Bb, 1, N] pixel coords -> sparse bilinear weights [Bb, HW, N].
        # Built separably: compares only over [Bb,H,N] and [Bb,W,N], then an
        # outer product (no integer div/mod over the HW axis).
        x0 = jnp.floor(x)
        y0 = jnp.floor(y)
        fx = x - x0
        fy = y - y0
        x0i = x0.astype(jnp.int32)
        y0i = y0.astype(jnp.int32)

        iota_h = lax.broadcasted_iota(jnp.int32, (Bb, H, N), 1)
        iota_w = lax.broadcasted_iota(jnp.int32, (Bb, W, N), 1)
        # zeros-padding semantics of F.grid_sample: out-of-range corner
        # rows/cols never match the iota, so they contribute 0.
        wy = (jnp.where(iota_h == y0i, 1.0 - fy, 0.0)
              + jnp.where(iota_h == y0i + 1, fy, 0.0))       # [Bb, H, N]
        wx = (jnp.where(iota_w == x0i, 1.0 - fx, 0.0)
              + jnp.where(iota_w == x0i + 1, fx, 0.0))       # [Bb, W, N]
        w4 = wy[:, :, None, :] * wx[:, None, :, :]           # [Bb, H, W, N]
        return w4.reshape(Bb, H * W, N)

    w1 = bilinear_weights(pk[:, 0:1, :], pk[:, 1:2, :])      # [Bb, HW, N]
    w2 = bilinear_weights(pk[:, 2:3, :], pk[:, 3:4, :])

    s1 = jnp.einsum('bch,bhn->bcn', f1, w1,
                    preferred_element_type=jnp.float32)      # [Bb, C, N]
    s2 = jnp.einsum('bch,bhn->bcn', f2, w2,
                    preferred_element_type=jnp.float32)

    # F.normalize(dim=-1, eps=1e-12):  v / max(||v||, eps) == v * rsqrt(max(||v||^2, eps^2))
    inv1 = lax.rsqrt(jnp.maximum(jnp.sum(s1 * s1, axis=1, keepdims=True), 1e-24))
    inv2 = lax.rsqrt(jnp.maximum(jnp.sum(s2 * s2, axis=1, keepdims=True), 1e-24))
    f1n = s1 * inv1
    f2n = s2 * inv2

    valid = pk[:, 4:5, :] * pk[:, 5:6, :]                    # [Bb, 1, N]
    cos = jnp.sum(f1n * f2n, axis=1, keepdims=True)          # [Bb, 1, N]
    l2 = jnp.sum((f1n - f2n) ** 2, axis=1, keepdims=True)    # [Bb, 1, N]
    loss_n = ((1.0 - cos) + l2) * valid                      # [Bb, 1, N]

    per_loss = jnp.sum(loss_n, axis=-1)                      # [Bb, 1]
    per_valid = jnp.sum(valid, axis=-1)                      # [Bb, 1]
    res = jnp.concatenate([per_loss, per_valid], axis=-1)    # [Bb, 2]
    out_ref[...] = res[None, :, :]


def _pick_batch_block(B, C, HW, feat_itemsize):
    """Largest divisor of B whose double-buffered working set fits a modest
    VMEM budget while keeping >= 2 grid steps (megacore sharding on v7x)."""
    budget = 20 * 1024 * 1024
    best = 1
    for bb in range(1, B + 1):
        if B % bb != 0:
            continue
        if B >= 2 and (B // bb) < 2:
            continue
        feat_bytes = 4 * bb * C * HW * feat_itemsize          # 2 feats x 2 buffers
        scratch = 8 * bb * HW * 128 * 4 + 8 * bb * max(C, 8) * 128 * 4
        if feat_bytes + scratch <= budget:
            best = bb
    return best


def combined_keypoint_loss(feat1, feat2, kp1, kp2, kp1_mask, kp2_mask,
                           *, batch_block=None):
    """feat1, feat2: [B, C, H, W]; kp1, kp2: [B, N, 2] pixel coords;
    kp1_mask, kp2_mask: [B, N] bool.  Returns scalar loss."""
    B, C, H, W = feat1.shape
    N = kp1.shape[1]
    HW = H * W

    # Free layout change: NCHW -> [B, C, HW] (flatten of trailing dims; no
    # transpose, no extra HBM traffic).  Feature dtype is kept as stored in
    # HBM (e.g. bf16 stays bf16); the kernel upcasts in VMEM.
    f1 = feat1.reshape(B, C, HW)
    f2 = feat2.reshape(B, C, HW)

    # Pack the four tiny per-keypoint operands into one [B, 8, N] array
    # (one small DMA per grid step instead of four).  Keypoints live on lanes.
    zeros = jnp.zeros((B, N), jnp.float32)
    packed = jnp.stack(
        [kp1[..., 0].astype(jnp.float32), kp1[..., 1].astype(jnp.float32),
         kp2[..., 0].astype(jnp.float32), kp2[..., 1].astype(jnp.float32),
         kp1_mask.astype(jnp.float32), kp2_mask.astype(jnp.float32),
         zeros, zeros], axis=1)                               # [B, 8, N]

    if batch_block is None:
        batch_block = _pick_batch_block(B, C, HW, jnp.dtype(feat1.dtype).itemsize)
    Bb = batch_block
    assert B % Bb == 0
    G = B // Bb

    kernel = functools.partial(_kp_loss_kernel, H, W)
    part = pl.pallas_call(
        kernel,
        out_shape=jax.ShapeDtypeStruct((G, Bb, 2), jnp.float32),
        grid_spec=pltpu.PrefetchScalarGridSpec(
            num_scalar_prefetch=0,
            grid=(G,),
            in_specs=[
                pl.BlockSpec((Bb, C, HW), lambda g: (g, 0, 0)),
                pl.BlockSpec((Bb, C, HW), lambda g: (g, 0, 0)),
                pl.BlockSpec((Bb, 8, N), lambda g: (g, 0, 0)),
            ],
            out_specs=pl.BlockSpec((1, Bb, 2), lambda g: (g, 0, 0)),
        ),
        compiler_params=pltpu.CompilerParams(
            dimension_semantics=("parallel",),
            vmem_limit_bytes=32 * 1024 * 1024),
    )(f1, f2, packed)

    part = part.reshape(B, 2)
    total_loss = jnp.sum(part[:, 0])
    total_valid = jnp.sum(part[:, 1])
    safe = total_loss / jnp.maximum(2.0 * total_valid, 1e-12)
    return jnp.where(total_valid > 0.0, safe, 0.0)


def _reference_loss(feat1, feat2, kp1, kp2, m1, m2):
    """Pure-JAX reference mirroring the PyTorch forward."""
    B, C, H, W = feat1.shape

    def sample_one(feat, kp):
        x = kp[:, 0]
        y = kp[:, 1]
        x0 = jnp.floor(x)
        y0 = jnp.floor(y)
        fx = x - x0
        fy = y - y0
        x0i = x0.astype(jnp.int32)
        y0i = y0.astype(jnp.int32)

        def corner(hi, wi):
            inb = (hi >= 0) & (hi < H) & (wi >= 0) & (wi < W)
            hc = jnp.clip(hi, 0, H - 1)
            wc = jnp.clip(wi, 0, W - 1)
            v = feat[:, hc, wc]  # [C, N]
            return jnp.where(inb[None, :], v, 0.0)

        v = (corner(y0i, x0i) * ((1 - fx) * (1 - fy))[None]
             + corner(y0i, x0i + 1) * (fx * (1 - fy))[None]
             + corner(y0i + 1, x0i) * ((1 - fx) * fy)[None]
             + corner(y0i + 1, x0i + 1) * (fx * fy)[None])
        return v.T  # [N, C]

    f1 = jax.vmap(sample_one)(feat1, kp1)
    f2 = jax.vmap(sample_one)(feat2, kp2)
    valid = (m1 & m2).astype(jnp.float32)  # [B, N]

    def normalize(f):
        n = jnp.sqrt(jnp.sum(f * f, axis=-1, keepdims=True))
        return f / jnp.maximum(n, 1e-12)

    f1n = normalize(f1)
    f2n = normalize(f2)
    cos = jnp.sum(f1n * f2n, axis=-1)
    cos_loss = (1.0 - cos) * valid
    l2_loss = jnp.sum((f1n - f2n) ** 2, axis=-1) * valid
    tv = valid.sum()
    return jnp.where(tv > 0, (cos_loss.sum() + l2_loss.sum()) / (2.0 * tv), 0.0)


if __name__ == "__main__":
    def run_case(key, B, C, H, W, N):
        k1, k2, k3, k4, k5, k6 = jax.random.split(key, 6)
        feat1 = jax.random.normal(k1, (B, C, H, W), dtype=jnp.float32)
        feat2 = jax.random.normal(k2, (B, C, H, W), dtype=jnp.float32)
        scale = jnp.array([W - 1.0, H - 1.0], dtype=jnp.float32)
        kp1 = jax.random.uniform(k3, (B, N, 2), dtype=jnp.float32) * scale
        kp2 = jax.random.uniform(k4, (B, N, 2), dtype=jnp.float32) * scale
        # Nudge a couple of keypoints slightly outside the image to exercise
        # grid_sample's zero-padding path.
        kp1 = kp1.at[:, 0, 0].set(-0.4)
        kp2 = kp2.at[:, -1, 1].set(float(H - 1) + 0.3)
        kp1_mask = jax.random.bernoulli(k5, 0.8, (B, N))
        kp2_mask = jax.random.bernoulli(k6, 0.8, (B, N))

        loss = combined_keypoint_loss(feat1, feat2, kp1, kp2, kp1_mask, kp2_mask)
        loss = jax.block_until_ready(loss)
        ref = jax.block_until_ready(
            _reference_loss(feat1, feat2, kp1, kp2, kp1_mask, kp2_mask))

        assert jnp.isfinite(loss), "non-finite loss"
        assert jnp.allclose(loss, ref, atol=2e-3, rtol=2e-3), (loss, ref)

    key = jax.random.PRNGKey(0)
    ka, kb = jax.random.split(key)
    run_case(ka, B=2, C=32, H=16, W=16, N=8)    # Bb = 1 -> grid of 2 (megacore)
    run_case(kb, B=4, C=48, H=8, W=16, N=16)    # Bb = 2 -> exercises batched block path
    print("KERNEL_OK")
</pallas_src>

<mosaic_0001>
module attributes {stable_mosaic.version = 11 : i64} {
  func.func @_kp_loss_kernel(%arg0: i32, %arg1: memref<1x32x256xf32, #tpu.memory_space<vmem>>, %arg2: memref<1x32x256xf32, #tpu.memory_space<vmem>>, %arg3: memref<1x8x8xf32, #tpu.memory_space<vmem>>, %arg4: memref<1x1x2xf32, #tpu.memory_space<vmem>>) attributes {dimension_semantics = [#tpu.dimension_semantics<parallel>], iteration_bounds = array<i64: 2>, scalar_prefetch = 0 : i64, scratch_operands = 0 : i64, tpu.core_type = #tpu.core_type<tc>, window_params = [{transform_indices = @transform_0, window_bounds = array<i64: 1, 32, 256>}, {transform_indices = @transform_1, window_bounds = array<i64: 1, 32, 256>}, {transform_indices = @transform_2, window_bounds = array<i64: 1, 8, 8>}, {transform_indices = @transform_3, window_bounds = array<i64: 1, 1, 2>}]} {
    %c0 = arith.constant 0 : index
    %c0_0 = arith.constant 0 : index
    %c0_1 = arith.constant 0 : index
    %0 = vector.load %arg1[%c0, %c0_0, %c0_1] : memref<1x32x256xf32, #tpu.memory_space<vmem>>, vector<1x32x256xf32>
    %c0_2 = arith.constant 0 : index
    %c0_3 = arith.constant 0 : index
    %c0_4 = arith.constant 0 : index
    %1 = vector.load %arg2[%c0_2, %c0_3, %c0_4] : memref<1x32x256xf32, #tpu.memory_space<vmem>>, vector<1x32x256xf32>
    %c0_5 = arith.constant 0 : index
    %c0_6 = arith.constant 0 : index
    %c0_7 = arith.constant 0 : index
    %2 = vector.load %arg3[%c0_5, %c0_6, %c0_7] : memref<1x8x8xf32, #tpu.memory_space<vmem>>, vector<1x8x8xf32>
    %3 = vector.extract_strided_slice %2 {offsets = [0, 0, 0], sizes = [1, 1, 8], strides = [1, 1, 1]} : vector<1x8x8xf32> to vector<1x1x8xf32>
    %4 = vector.extract_strided_slice %2 {offsets = [0, 1, 0], sizes = [1, 1, 8], strides = [1, 1, 1]} : vector<1x8x8xf32> to vector<1x1x8xf32>
    %5 = math.floor %3 : vector<1x1x8xf32>
    %6 = math.floor %4 : vector<1x1x8xf32>
    %7 = arith.subf %3, %5 : vector<1x1x8xf32>
    %8 = arith.subf %4, %6 : vector<1x1x8xf32>
    %9 = arith.fptosi %5 : vector<1x1x8xf32> to vector<1x1x8xi32>
    %10 = arith.fptosi %6 : vector<1x1x8xf32> to vector<1x1x8xi32>
    %11 = tpu.iota {dimensions = array<i32: 1>} : vector<1x16x8xi32>
    %12 = tpu.iota {dimensions = array<i32: 1>} : vector<1x16x8xi32>
    %13 = vector.broadcast %10 : vector<1x1x8xi32> to vector<1x16x8xi32>
    %14 = arith.cmpi eq, %11, %13 : vector<1x16x8xi32>
    %cst = arith.constant 1.000000e+00 : f32
    %15 = vector.broadcast %cst : f32 to vector<1x1x8xf32>
    %16 = arith.subf %15, %8 : vector<1x1x8xf32>
    %cst_8 = arith.constant 0.000000e+00 : f32
    %17 = vector.shape_cast %16 : vector<1x1x8xf32> to vector<1x1x8xf32>
    %18 = vector.broadcast %17 : vector<1x1x8xf32> to vector<1x16x8xf32>
    %19 = vector.broadcast %cst_8 : f32 to vector<1x16x8xf32>
    %20 = arith.select %14, %18, %19 : vector<1x16x8xi1>, vector<1x16x8xf32>
    %c1_i32 = arith.constant 1 : i32
    %21 = vector.broadcast %c1_i32 : i32 to vector<1x1x8xi32>
    %22 = arith.addi %10, %21 : vector<1x1x8xi32>
    %23 = vector.broadcast %22 : vector<1x1x8xi32> to vector<1x16x8xi32>
    %24 = arith.cmpi eq, %11, %23 : vector<1x16x8xi32>
    %cst_9 = arith.constant 0.000000e+00 : f32
    %25 = vector.shape_cast %8 : vector<1x1x8xf32> to vector<1x1x8xf32>
    %26 = vector.broadcast %25 : vector<1x1x8xf32> to vector<1x16x8xf32>
    %27 = vector.broadcast %cst_9 : f32 to vector<1x16x8xf32>
    %28 = arith.select %24, %26, %27 : vector<1x16x8xi1>, vector<1x16x8xf32>
    %29 = arith.addf %20, %28 : vector<1x16x8xf32>
    %30 = vector.broadcast %9 : vector<1x1x8xi32> to vector<1x16x8xi32>
    %31 = arith.cmpi eq, %12, %30 : vector<1x16x8xi32>
    %cst_10 = arith.constant 1.000000e+00 : f32
    %32 = vector.broadcast %cst_10 : f32 to vector<1x1x8xf32>
    %33 = arith.subf %32, %7 : vector<1x1x8xf32>
    %cst_11 = arith.constant 0.000000e+00 : f32
    %34 = vector.shape_cast %33 : vector<1x1x8xf32> to vector<1x1x8xf32>
    %35 = vector.broadcast %34 : vector<1x1x8xf32> to vector<1x16x8xf32>
    %36 = vector.broadcast %cst_11 : f32 to vector<1x16x8xf32>
    %37 = arith.select %31, %35, %36 : vector<1x16x8xi1>, vector<1x16x8xf32>
    %c1_i32_12 = arith.constant 1 : i32
    %38 = vector.broadcast %c1_i32_12 : i32 to vector<1x1x8xi32>
    %39 = arith.addi %9, %38 : vector<1x1x8xi32>
    %40 = vector.broadcast %39 : vector<1x1x8xi32> to vector<1x16x8xi32>
    %41 = arith.cmpi eq, %12, %40 : vector<1x16x8xi32>
    %cst_13 = arith.constant 0.000000e+00 : f32
    %42 = vector.shape_cast %7 : vector<1x1x8xf32> to vector<1x1x8xf32>
    %43 = vector.broadcast %42 : vector<1x1x8xf32> to vector<1x16x8xf32>
    %44 = vector.broadcast %cst_13 : f32 to vector<1x16x8xf32>
    %45 = arith.select %41, %43, %44 : vector<1x16x8xi1>, vector<1x16x8xf32>
    %46 = arith.addf %37, %45 : vector<1x16x8xf32>
    %47 = vector.shape_cast %29 : vector<1x16x8xf32> to vector<1x16x1x8xf32>
    %48 = vector.shape_cast %46 : vector<1x16x8xf32> to vector<1x1x16x8xf32>
    %49 = vector.broadcast %47 : vector<1x16x1x8xf32> to vector<1x16x16x8xf32>
    %50 = vector.broadcast %48 : vector<1x1x16x8xf32> to vector<1x16x16x8xf32>
    %51 = arith.mulf %49, %50 : vector<1x16x16x8xf32>
    %52 = vector.shape_cast %51 : vector<1x16x16x8xf32> to vector<1x256x8xf32>
    %53 = vector.extract_strided_slice %2 {offsets = [0, 2, 0], sizes = [1, 1, 8], strides = [1, 1, 1]} : vector<1x8x8xf32> to vector<1x1x8xf32>
    %54 = vector.extract_strided_slice %2 {offsets = [0, 3, 0], sizes = [1, 1, 8], strides = [1, 1, 1]} : vector<1x8x8xf32> to vector<1x1x8xf32>
    %55 = math.floor %53 : vector<1x1x8xf32>
    %56 = math.floor %54 : vector<1x1x8xf32>
    %57 = arith.subf %53, %55 : vector<1x1x8xf32>
    %58 = arith.subf %54, %56 : vector<1x1x8xf32>
    %59 = arith.fptosi %55 : vector<1x1x8xf32> to vector<1x1x8xi32>
    %60 = arith.fptosi %56 : vector<1x1x8xf32> to vector<1x1x8xi32>
    %61 = tpu.iota {dimensions = array<i32: 1>} : vector<1x16x8xi32>
    %62 = tpu.iota {dimensions = array<i32: 1>} : vector<1x16x8xi32>
    %63 = vector.broadcast %60 : vector<1x1x8xi32> to vector<1x16x8xi32>
    %64 = arith.cmpi eq, %61, %63 : vector<1x16x8xi32>
    %cst_14 = arith.constant 1.000000e+00 : f32
    %65 = vector.broadcast %cst_14 : f32 to vector<1x1x8xf32>
    %66 = arith.subf %65, %58 : vector<1x1x8xf32>
    %cst_15 = arith.constant 0.000000e+00 : f32
    %67 = vector.shape_cast %66 : vector<1x1x8xf32> to vector<1x1x8xf32>
    %68 = vector.broadcast %67 : vector<1x1x8xf32> to vector<1x16x8xf32>
    %69 = vector.broadcast %cst_15 : f32 to vector<1x16x8xf32>
    %70 = arith.select %64, %68, %69 : vector<1x16x8xi1>, vector<1x16x8xf32>
    %c1_i32_16 = arith.constant 1 : i32
    %71 = vector.broadcast %c1_i32_16 : i32 to vector<1x1x8xi32>
    %72 = arith.addi %60, %71 : vector<1x1x8xi32>
    %73 = vector.broadcast %72 : vector<1x1x8xi32> to vector<1x16x8xi32>
    %74 = arith.cmpi eq, %61, %73 : vector<1x16x8xi32>
    %cst_17 = arith.constant 0.000000e+00 : f32
    %75 = vector.shape_cast %58 : vector<1x1x8xf32> to vector<1x1x8xf32>
    %76 = vector.broadcast %75 : vector<1x1x8xf32> to vector<1x16x8xf32>
    %77 = vector.broadcast %cst_17 : f32 to vector<1x16x8xf32>
    %78 = arith.select %74, %76, %77 : vector<1x16x8xi1>, vector<1x16x8xf32>
    %79 = arith.addf %70, %78 : vector<1x16x8xf32>
    %80 = vector.broadcast %59 : vector<1x1x8xi32> to vector<1x16x8xi32>
    %81 = arith.cmpi eq, %62, %80 : vector<1x16x8xi32>
    %cst_18 = arith.constant 1.000000e+00 : f32
    %82 = vector.broadcast %cst_18 : f32 to vector<1x1x8xf32>
    %83 = arith.subf %82, %57 : vector<1x1x8xf32>
    %cst_19 = arith.constant 0.000000e+00 : f32
    %84 = vector.shape_cast %83 : vector<1x1x8xf32> to vector<1x1x8xf32>
    %85 = vector.broadcast %84 : vector<1x1x8xf32> to vector<1x16x8xf32>
    %86 = vector.broadcast %cst_19 : f32 to vector<1x16x8xf32>
    %87 = arith.select %81, %85, %86 : vector<1x16x8xi1>, vector<1x16x8xf32>
    %c1_i32_20 = arith.constant 1 : i32
    %88 = vector.broadcast %c1_i32_20 : i32 to vector<1x1x8xi32>
    %89 = arith.addi %59, %88 : vector<1x1x8xi32>
    %90 = vector.broadcast %89 : vector<1x1x8xi32> to vector<1x16x8xi32>
    %91 = arith.cmpi eq, %62, %90 : vector<1x16x8xi32>
    %cst_21 = arith.constant 0.000000e+00 : f32
    %92 = vector.shape_cast %57 : vector<1x1x8xf32> to vector<1x1x8xf32>
    %93 = vector.broadcast %92 : vector<1x1x8xf32> to vector<1x16x8xf32>
    %94 = vector.broadcast %cst_21 : f32 to vector<1x16x8xf32>
    %95 = arith.select %91, %93, %94 : vector<1x16x8xi1>, vector<1x16x8xf32>
    %96 = arith.addf %87, %95 : vector<1x16x8xf32>
    %97 = vector.shape_cast %79 : vector<1x16x8xf32> to vector<1x16x1x8xf32>
    %98 = vector.shape_cast %96 : vector<1x16x8xf32> to vector<1x1x16x8xf32>
    %99 = vector.broadcast %97 : vector<1x16x1x8xf32> to vector<1x16x16x8xf32>
    %100 = vector.broadcast %98 : vector<1x1x16x8xf32> to vector<1x16x16x8xf32>
    %101 = arith.mulf %99, %100 : vector<1x16x16x8xf32>
    %102 = vector.shape_cast %101 : vector<1x16x16x8xf32> to vector<1x256x8xf32>
    "tpu.trace_start"() <{level = 10 : i32, message = "bch,bhn->bcn"}> : () -> ()
    %cst_22 = arith.constant dense<0.000000e+00> : vector<1x32x8xf32>
    %103 = tpu.matmul %0, %52, %cst_22 {dimension_numbers = #tpu.dot_dimension_numbers<[2], [1], [1], [2], [0, 0, 0, 1, 1, 2], [0], [0]>} : vector<1x32x256xf32>, vector<1x256x8xf32>, vector<1x32x8xf32> -> vector<1x32x8xf32>
    %cst_23 = arith.constant dense<0.000000e+00> : vector<1x32x8xf32>
    %104 = tpu.matmul %1, %102, %cst_23 {dimension_numbers = #tpu.dot_dimension_numbers<[2], [1], [1], [2], [0, 0, 0, 1, 1, 2], [0], [0]>} : vector<1x32x256xf32>, vector<1x256x8xf32>, vector<1x32x8xf32> -> vector<1x32x8xf32>
    "tpu.trace_stop"() : () -> ()
    %105 = arith.mulf %103, %103 : vector<1x32x8xf32>
    %cst_24 = arith.constant dense<0.000000e+00> : vector<1x8xf32>
    %106 = vector.multi_reduction <add>, %105, %cst_24 [1] : vector<1x32x8xf32> to vector<1x8xf32>
    %107 = vector.shape_cast %106 : vector<1x8xf32> to vector<1x1x8xf32>
    %cst_25 = arith.constant 1.000000e-24 : f32
    %108 = vector.broadcast %cst_25 : f32 to vector<1x1x8xf32>
    %109 = arith.maximumf %107, %108 : vector<1x1x8xf32>
    %110 = math.rsqrt %109 : vector<1x1x8xf32>
    %111 = arith.mulf %104, %104 : vector<1x32x8xf32>
    %cst_26 = arith.constant dense<0.000000e+00> : vector<1x8xf32>
    %112 = vector.multi_reduction <add>, %111, %cst_26 [1] : vector<1x32x8xf32> to vector<1x8xf32>
    %113 = vector.shape_cast %112 : vector<1x8xf32> to vector<1x1x8xf32>
    %cst_27 = arith.constant 1.000000e-24 : f32
    %114 = vector.broadcast %cst_27 : f32 to vector<1x1x8xf32>
    %115 = arith.maximumf %113, %114 : vector<1x1x8xf32>
    %116 = math.rsqrt %115 : vector<1x1x8xf32>
    %117 = vector.broadcast %110 : vector<1x1x8xf32> to vector<1x32x8xf32>
    %118 = arith.mulf %103, %117 : vector<1x32x8xf32>
    %119 = vector.broadcast %116 : vector<1x1x8xf32> to vector<1x32x8xf32>
    %120 = arith.mulf %104, %119 : vector<1x32x8xf32>
    %121 = vector.extract_strided_slice %2 {offsets = [0, 4, 0], sizes = [1, 1, 8], strides = [1, 1, 1]} : vector<1x8x8xf32> to vector<1x1x8xf32>
    %122 = vector.extract_strided_slice %2 {offsets = [0, 5, 0], sizes = [1, 1, 8], strides = [1, 1, 1]} : vector<1x8x8xf32> to vector<1x1x8xf32>
    %123 = arith.mulf %121, %122 : vector<1x1x8xf32>
    %124 = arith.mulf %118, %120 : vector<1x32x8xf32>
    %cst_28 = arith.constant dense<0.000000e+00> : vector<1x8xf32>
    %125 = vector.multi_reduction <add>, %124, %cst_28 [1] : vector<1x32x8xf32> to vector<1x8xf32>
    %126 = vector.shape_cast %125 : vector<1x8xf32> to vector<1x1x8xf32>
    %127 = arith.subf %118, %120 : vector<1x32x8xf32>
    %128 = arith.mulf %127, %127 : vector<1x32x8xf32>
    %cst_29 = arith.constant dense<0.000000e+00> : vector<1x8xf32>
    %129 = vector.multi_reduction <add>, %128, %cst_29 [1] : vector<1x32x8xf32> to vector<1x8xf32>
    %130 = vector.shape_cast %129 : vector<1x8xf32> to vector<1x1x8xf32>
    %cst_30 = arith.constant 1.000000e+00 : f32
    %131 = vector.broadcast %cst_30 : f32 to vector<1x1x8xf32>
    %132 = arith.subf %131, %126 : vector<1x1x8xf32>
    %133 = arith.addf %132, %130 : vector<1x1x8xf32>
    %134 = arith.mulf %133, %123 : vector<1x1x8xf32>
    %cst_31 = arith.constant dense<0.000000e+00> : vector<1x1xf32>
    %135 = vector.multi_reduction <add>, %134, %cst_31 [2] : vector<1x1x8xf32> to vector<1x1xf32>
    %cst_32 = arith.constant dense<0.000000e+00> : vector<1x1xf32>
    %136 = vector.multi_reduction <add>, %123, %cst_32 [2] : vector<1x1x8xf32> to vector<1x1xf32>
    %137 = tpu.concatenate %135, %136 in 1 : vector<1x1xf32>, vector<1x1xf32> -> vector<1x2xf32>
    %138 = vector.shape_cast %137 : vector<1x2xf32> to vector<1x1x2xf32>
    %c0_33 = arith.constant 0 : index
    %c0_34 = arith.constant 0 : index
    %c0_35 = arith.constant 0 : index
    %139 = vector.load %arg4[%c0_33, %c0_34, %c0_35] : memref<1x1x2xf32, #tpu.memory_space<vmem>>, vector<1x1x2xf32>
    tpu.vector_store %arg4[%c0_33, %c0_34, %c0_35], %138 {strides = array<i32>} : memref<1x1x2xf32, #tpu.memory_space<vmem>>, vector<1x1x2xf32>,
    return
  }
  func.func @transform_0(%arg0: i32) -> (i32, i32, i32) {
    %c0_i32 = arith.constant 0 : i32
    %c0_i32_0 = arith.constant 0 : i32
    %c0_i32_1 = arith.constant 0 : i32
    return %arg0, %c0_i32, %c0_i32_0 : i32, i32, i32
  }
  func.func @transform_1(%arg0: i32) -> (i32, i32, i32) {
    %c0_i32 = arith.constant 0 : i32
    %c0_i32_0 = arith.constant 0 : i32
    %c0_i32_1 = arith.constant 0 : i32
    return %arg0, %c0_i32, %c0_i32_0 : i32, i32, i32
  }
  func.func @transform_2(%arg0: i32) -> (i32, i32, i32) {
    %c0_i32 = arith.constant 0 : i32
    %c0_i32_0 = arith.constant 0 : i32
    %c0_i32_1 = arith.constant 0 : i32
    return %arg0, %c0_i32, %c0_i32_0 : i32, i32, i32
  }
  func.func @transform_3(%arg0: i32) -> (i32, i32, i32) {
    %c0_i32 = arith.constant 0 : i32
    %c0_i32_0 = arith.constant 0 : i32
    %c0_i32_1 = arith.constant 0 : i32
    return %arg0, %c0_i32, %c0_i32_0 : i32, i32, i32
  }
}

</mosaic_0001>

<llo_original>
// kernel: tpu_custom_call.1
$region0: #{tpu_custom_call.1}
  #allocation0 [shape = 'u32[]', space=smem, size = 0x4, offset = 0x4, fixed_abs, tag = 'smem constant byte address 0x4 - core index']
  #allocation1 [shape = 'u32[72,128]{1,0:T(1,128)}', space=vmem, size = 0x9000, scoped, tag = 'internal scratch']
  %s0 = inlined_call_operand.hbm [shape: f32[2,32,256], index: 0, kind: input, shape index: {}]
  %s1 = inlined_call_operand.hbm [shape: f32[2,32,256], index: 1, kind: input, shape index: {}]
  %s2 = inlined_call_operand.hbm [shape: f32[2,8,8], index: 2, kind: input, shape index: {}]
  %s3 = inlined_call_operand.hbm [shape: f32[2,1,2], index: 3, kind: output, shape index: {}]
  %s4 = sld [smem:[#allocation0]]
  $region57: #{tpu_custom_call.1} parent=0
    _
  %s6 = ssub.s32 1, %s4
  %s7 = scalar_select 0, %s6, %s4
  $region1: #{tpu_custom_call.1} parent=0
    #allocation2 [shape = 'u8[65536]{0}', space=vmem, size = 0x10000, scoped, tag = 'input window, operand 0']
    #allocation3 [shape = 's32[2]{0}', space=sflag, size = 0x8, scoped, tag = 'scoped memory for tpu_custom_call.1']
    #allocation4 [shape = 's32[2]{0}', space=sflag, size = 0x8, scoped, tag = 'scoped memory for tpu_custom_call.1']
    #allocation5 [shape = 'u8[65536]{0}', space=vmem, size = 0x10000, scoped, tag = 'input window, operand 1']
    #allocation6 [shape = 's32[2]{0}', space=sflag, size = 0x8, scoped, tag = 'scoped memory for tpu_custom_call.1']
    #allocation7 [shape = 'u8[8192]{0}', space=vmem, size = 0x2000, scoped, tag = 'input window, operand 2']
    #allocation8 [shape = 'u8[1024]{0}', space=vmem, size = 0x400, scoped, tag = 'output window, operand 0']
    %8 = vsyncpa [#allocation3], 0
    %s9 = scalar_lea.sflag [#allocation3], 1
    %10 = vsyncpa %s9, 0
    %11 = vsyncpa [#allocation6], 0
    %s12 = scalar_lea.sflag [#allocation6], 1
    %13 = vsyncpa %s12, 0
    %14 = vsyncpa [#allocation4], 0
    %s15 = scalar_lea.sflag [#allocation4], 1
    %16 = vsyncpa %s15, 0
    loop: start=0, step=1, limit=4
    $region2: #{tpu_custom_call.1} parent=1 // loop_pre_header
      _
    $region3: #{tpu_custom_call.1} parent=1 // loop_header
      %s18 = sphi 0, %s22
      %p19 = scmp.ge.s32.totalorder %s18, 4
      %s28 = sphi 0, %s30
      %s31 = sphi 0, %s28
      %s32 = sphi 0, %s31
      %s48 = sphi 0, %s32
      %s54 = sphi 0, %s56
      %s57 = sphi 0, %s54
      %s58 = sphi 0, %s57
      %s74 = sphi 0, %s58
      %s80 = sphi 0, %s82
      %s83 = sphi 0, %s80
      %s84 = sphi 0, %s83
      %s100 = sphi 0, %s84
      %s106 = sphi 0, %s108
      %s109 = sphi 0, %s106
      %s110 = sphi 0, %s109
      %s126 = sphi 0, %s110
    $region4: #{tpu_custom_call.1} parent=1 // loop_header_branch
      %21 = sbr.rel (%p19) target = $region8
    $region5: #{tpu_custom_call.1} parent=1 // loop_body
      %s23 = ssub.s32 %s18, 1
      %s24 = ssub.s32 %s18, 2
      %s25 = sadd.s32 %s18, 1
      %s26 = ssub.s32 %s18, %s25
      %p27 = scmp.eq.s32.totalorder %s26, 0
      %s29 = sadd.s32 %s28, 1
      %s30 = scalar_select %p27, %s28, %s29
      %p33 = pneg %p27
      %p34 = scmp.eq.s32.totalorder %s18, 1
      %p35 = por %p33, %p34
      %p36 = scmp.ne.s32.totalorder %s28, %s31
      %p37 = scmp.eq.s32.totalorder %s18, 0
      %p38 = por %p36, %p37
      %p39 = scmp.ne.s32.totalorder %s28, %s31
      %p40 = scmp.eq.s32.totalorder %s23, 1
      %p41 = por %p39, %p40
      %p42 = scmp.ne.s32.totalorder %s31, %s32
      %p43 = scmp.eq.s32.totalorder %s23, 0
      %p44 = por %p42, %p43
      %p45 = scmp.ne.s32.totalorder %s31, %s32
      %p46 = scmp.eq.s32.totalorder %s24, 1
      %p47 = por %p45, %p46
      %p49 = scmp.ne.s32.totalorder %s32, %s48
      %p50 = scmp.eq.s32.totalorder %s24, 0
      %p51 = por %p49, %p50
      %s52 = ssub.s32 %s18, %s25
      %p53 = scmp.eq.s32.totalorder %s52, 0
      %s55 = sadd.s32 %s54, 1
      %s56 = scalar_select %p53, %s54, %s55
      %p59 = pneg %p53
      %p60 = scmp.eq.s32.totalorder %s18, 1
      %p61 = por %p59, %p60
      %p62 = scmp.ne.s32.totalorder %s54, %s57
      %p63 = scmp.eq.s32.totalorder %s18, 0
      %p64 = por %p62, %p63
      %p65 = scmp.ne.s32.totalorder %s54, %s57
      %p66 = scmp.eq.s32.totalorder %s23, 1
      %p67 = por %p65, %p66
      %p68 = scmp.ne.s32.totalorder %s57, %s58
      %p69 = scmp.eq.s32.totalorder %s23, 0
      %p70 = por %p68, %p69
      %p71 = scmp.ne.s32.totalorder %s57, %s58
      %p72 = scmp.eq.s32.totalorder %s24, 1
      %p73 = por %p71, %p72
      %p75 = scmp.ne.s32.totalorder %s58, %s74
      %p76 = scmp.eq.s32.totalorder %s24, 0
      %p77 = por %p75, %p76
      %s78 = ssub.s32 %s18, %s25
      %p79 = scmp.eq.s32.totalorder %s78, 0
      %s81 = sadd.s32 %s80, 1
      %s82 = scalar_select %p79, %s80, %s81
      %p85 = pneg %p79
      %p86 = scmp.eq.s32.totalorder %s18, 1
      %p87 = por %p85, %p86
      %p88 = scmp.ne.s32.totalorder %s80, %s83
      %p89 = scmp.eq.s32.totalorder %s18, 0
      %p90 = por %p88, %p89
      %p91 = scmp.ne.s32.totalorder %s80, %s83
      %p92 = scmp.eq.s32.totalorder %s23, 1
      %p93 = por %p91, %p92
      %p94 = scmp.ne.s32.totalorder %s83, %s84
      %p95 = scmp.eq.s32.totalorder %s23, 0
      %p96 = por %p94, %p95
      %p97 = scmp.ne.s32.totalorder %s83, %s84
      %p98 = scmp.eq.s32.totalorder %s24, 1
      %p99 = por %p97, %p98
      %p101 = scmp.ne.s32.totalorder %s84, %s100
      %p102 = scmp.eq.s32.totalorder %s24, 0
      %p103 = por %p101, %p102
      %s104 = ssub.s32 %s18, %s25
      %p105 = scmp.eq.s32.totalorder %s104, 0
      %s107 = sadd.s32 %s106, 1
      %s108 = scalar_select %p105, %s106, %s107
      %p111 = pneg %p105
      %p112 = scmp.eq.s32.totalorder %s18, 1
      %p113 = por %p111, %p112
      %p114 = scmp.ne.s32.totalorder %s106, %s109
      %p115 = scmp.eq.s32.totalorder %s18, 0
      %p116 = por %p114, %p115
      %p117 = scmp.ne.s32.totalorder %s106, %s109
      %p118 = scmp.eq.s32.totalorder %s23, 1
      %p119 = por %p117, %p118
      %p120 = scmp.ne.s32.totalorder %s109, %s110
      %p121 = scmp.eq.s32.totalorder %s23, 0
      %p122 = por %p120, %p121
      %p123 = scmp.ne.s32.totalorder %s109, %s110
      %p124 = scmp.eq.s32.totalorder %s24, 1
      %p125 = por %p123, %p124
      %p127 = scmp.ne.s32.totalorder %s110, %s126
      %p128 = scmp.eq.s32.totalorder %s24, 0
      %p129 = por %p127, %p128
      %p130 = scmp.le.s32.totalorder 1, %s18
      %p131 = scmp.lt.s32.totalorder %s18, 3
      %p132 = pnand %p130, %p131
      %p133 = pneg %p132
      // Predicated region
      $region9: #{tpu_custom_call.1} parent=5 // pred_check
        _
      $region10: #{tpu_custom_call.1} parent=5 // pred_check_branch
        %135 = sbr.rel (%p132) target = $region12
      $region11: #{tpu_custom_call.1} parent=5 // pred_region
        %s136 = ssub.s32 %s18, 1
      $region12: #{tpu_custom_call.1} parent=5 // pred_fallthru
        _
      %p137 = scmp.lt.s32.totalorder %s18, 2
      // Predicated region
      $region13: #{tpu_custom_call.1} parent=5 // pred_check
        %p138 = pneg %p137
      $region14: #{tpu_custom_call.1} parent=5 // pred_check_branch
        %140 = sbr.rel (%p138) target = $region16
      $region15: #{tpu_custom_call.1} parent=5 // pred_region
        // Predicated region
        $region17: #{tpu_custom_call.1} parent=15 // pred_check
          %p141 = pneg %p38
        $region18: #{tpu_custom_call.1} parent=15 // pred_check_branch
          %143 = sbr.rel (%p141) target = $region20
        $region19: #{tpu_custom_call.1} parent=15 // pred_region
          %s144 = sand.u32 %s28, 1
          %s145 = scalar_lea.sflag [#allocation3], %s144
          %s146 = sand.u32 %s28, 1
          %s147 = smul.addr %s146, 64
          %s148 = scalar_lea.vmem [#allocation2], %s147
          %150 = vsyncadd %s145, 0
          %s151 = smul.addr %s18, 8
          %s152 = smul.addr %s151, 8
          %s153 = scalar_lea.hbm %s0, %s152
          %s154 = sshll.u32 %s153, 4
          %s155 = int_to_ptr.hbm [resolvable:$true] %s154
          %s156 = sshll.u32 %s148, 4
          %s157 = int_to_ptr.vmem [resolvable:$true] %s156
          %162 = dma.hbm_to_vmem [thread:$0]  %s155, 1024, %s157, %s145, 256, 256, 16
        $region20: #{tpu_custom_call.1} parent=15 // pred_fallthru
          _
        // Predicated region
        $region21: #{tpu_custom_call.1} parent=15 // pred_check
          %p163 = pneg %p64
        $region22: #{tpu_custom_call.1} parent=15 // pred_check_branch
          %165 = sbr.rel (%p163) target = $region24
        $region23: #{tpu_custom_call.1} parent=15 // pred_region
          %s166 = sand.u32 %s18, 1
          %s167 = scalar_lea.sflag [#allocation6], %s166
          %s168 = sand.u32 %s54, 1
          %s169 = smul.addr %s168, 64
          %s170 = scalar_lea.vmem [#allocation5], %s169
          %172 = vsyncadd %s167, 0
          %s173 = smul.addr %s18, 8
          %s174 = smul.addr %s173, 8
          %s175 = scalar_lea.hbm %s1, %s174
          %s176 = sshll.u32 %s175, 4
          %s177 = int_to_ptr.hbm [resolvable:$true] %s176
          %s178 = sshll.u32 %s170, 4
          %s179 = int_to_ptr.vmem [resolvable:$true] %s178
          %184 = dma.hbm_to_vmem [thread:$0]  %s177, 1024, %s179, %s167, 256, 256, 16
        $region24: #{tpu_custom_call.1} parent=15 // pred_fallthru
          _
        // Predicated region
        $region25: #{tpu_custom_call.1} parent=15 // pred_check
          %p185 = pneg %p90
        $region26: #{tpu_custom_call.1} parent=15 // pred_check_branch
          %187 = sbr.rel (%p185) target = $region28
        $region27: #{tpu_custom_call.1} parent=15 // pred_region
          %s188 = sand.u32 %s18, 1
          %s189 = scalar_lea.sflag [#allocation6], %s188
          %s190 = sand.u32 %s80, 1
          %s191 = smul.addr %s190, 8
          %s192 = scalar_lea.vmem [#allocation7], %s191
          %194 = vsyncadd %s189, 0
          %s195 = smul.addr %s18, 8
          %s196 = scalar_lea.hbm %s2, %s195
          %s198 = sshll.u32 %s196, 4
          %s199 = int_to_ptr.hbm [resolvable:$true] %s198
          %s200 = sshll.u32 %s192, 4
          %s201 = int_to_ptr.vmem [resolvable:$true] %s200
          %203 = dma.hbm_to_vmem [thread:$0]  %s199, 128, %s201, %s189
        $region28: #{tpu_custom_call.1} parent=15 // pred_fallthru
          _
      $region16: #{tpu_custom_call.1} parent=5 // pred_fallthru
        _
      %p204 = scmp.le.s32.totalorder 1, %s18
      %p205 = scmp.lt.s32.totalorder %s18, 3
      %p206 = pnand %p204, %p205
      %p207 = pneg %p206
      // Predicated region
      $region29: #{tpu_custom_call.1} parent=5 // pred_check
        _
      $region30: #{tpu_custom_call.1} parent=5 // pred_check_branch
        %209 = sbr.rel (%p206) target = $region32
      $region31: #{tpu_custom_call.1} parent=5 // pred_region
        %s210 = ssub.s32 %s18, 1
        %s211 = sand.u32 %s31, 1
        %s212 = scalar_lea.sflag [#allocation3], %s211
        %s213 = sand.u32 %s31, 1
        %s214 = smul.addr %s213, 64
        %s215 = scalar_lea.vmem [#allocation2], %s214
        // Predicated region
        $region33: #{tpu_custom_call.1} parent=31 // pred_check
          %p216 = pneg %p44
        $region34: #{tpu_custom_call.1} parent=31 // pred_check_branch
          %218 = sbr.rel (%p216) target = $region36
        $region35: #{tpu_custom_call.1} parent=31 // pred_region
          %220 = dma.done %s212, 1024
        $region36: #{tpu_custom_call.1} parent=31 // pred_fallthru
          _
        %s221 = sand.u32 %s23, 1
        %s222 = scalar_lea.sflag [#allocation6], %s221
        %s223 = sand.u32 %s57, 1
        %s224 = smul.addr %s223, 64
        %s225 = scalar_lea.vmem [#allocation5], %s224
        // Predicated region
        $region37: #{tpu_custom_call.1} parent=31 // pred_check
          %p226 = pneg %p70
        $region38: #{tpu_custom_call.1} parent=31 // pred_check_branch
          %228 = sbr.rel (%p226) target = $region40
        $region39: #{tpu_custom_call.1} parent=31 // pred_region
          %230 = dma.done %s222, 1024
        $region40: #{tpu_custom_call.1} parent=31 // pred_fallthru
          _
        %s231 = sand.u32 %s23, 1
        %s232 = scalar_lea.sflag [#allocation6], %s231
        %s233 = sand.u32 %s83, 1
        %s234 = smul.addr %s233, 8
        %s235 = scalar_lea.vmem [#allocation7], %s234
        // Predicated region
        $region41: #{tpu_custom_call.1} parent=31 // pred_check
          %p236 = pneg %p96
        $region42: #{tpu_custom_call.1} parent=31 // pred_check_branch
          %238 = sbr.rel (%p236) target = $region44
        $region43: #{tpu_custom_call.1} parent=31 // pred_region
          %240 = dma.done %s232, 128
        $region44: #{tpu_custom_call.1} parent=31 // pred_fallthru
          _
        %s241 = sand.u32 %s31, 1
        %s242 = scalar_lea.sflag [#allocation3], %s241
        %s243 = sand.u32 %s31, 1
        %s244 = smul.addr %s243, 64
        %s245 = scalar_lea.vmem [#allocation2], %s244
        %p246 = pneg %p44
        %p247 = pneg %p41
        %s248 = sand.u32 %s23, 1
        %s249 = scalar_lea.sflag [#allocation6], %s248
        %s250 = sand.u32 %s57, 1
        %s251 = smul.addr %s250, 64
        %s252 = scalar_lea.vmem [#allocation5], %s251
        %p253 = pneg %p70
        %p254 = pneg %p67
        %s255 = sand.u32 %s23, 1
        %s256 = scalar_lea.sflag [#allocation6], %s255
        %s257 = sand.u32 %s83, 1
        %s258 = smul.addr %s257, 8
        %s259 = scalar_lea.vmem [#allocation7], %s258
        %p260 = pneg %p96
        %p261 = pneg %p93
        %p262 = pneg %p122
        %p263 = pneg %p119
        %s264 = sand.u32 %s109, 1
        %s265 = scalar_lea.sflag [#allocation4], %s264
        %s266 = sand.u32 %s109, 1
        %s267 = scalar_lea.vmem [#allocation8], %s266
        %v268 = vld [vmem:[%s215] sm:$0xff]
        %v269 = vld [vmem:[%s215 + $0x8] sm:$0xff]
        %v270 = vld [vmem:[%s215 + $0x10] sm:$0xff]
        %v271 = vld [vmem:[%s215 + $0x18] sm:$0xff]
        %v272 = vld [vmem:[%s215 + $0x20] sm:$0xff]
        %v273 = vld [vmem:[%s215 + $0x28] sm:$0xff]
        %v274 = vld [vmem:[%s215 + $0x30] sm:$0xff]
        %v275 = vld [vmem:[%s215 + $0x38] sm:$0xff]
        %v276 = vld [vmem:[%s225] sm:$0xff]
        %v277 = vld [vmem:[%s225 + $0x8] sm:$0xff]
        %v278 = vld [vmem:[%s225 + $0x10] sm:$0xff]
        %v279 = vld [vmem:[%s225 + $0x18] sm:$0xff]
        %v280 = vld [vmem:[%s225 + $0x20] sm:$0xff]
        %v281 = vld [vmem:[%s225 + $0x28] sm:$0xff]
        %v282 = vld [vmem:[%s225 + $0x30] sm:$0xff]
        %v283 = vld [vmem:[%s225 + $0x38] sm:$0xff]
        %v284 = vld [vmem:[%s235] sm:$0xff]
        %v285 = vfloor.f32 %v284
        %v286 = vsub.f32 %v284, %v285
        %v287 = vcvt.f32.s32.to.zero.pseudo %v285
        %v288 = vlaneseq
        %v289 = vshrl.u32 %v288, 7
        %v290 = vadd.s32 %v289, 8
        %v291 = vperm.slane %v287, 1
        %vm292 = vcmp.eq.s32.totalorder %v289, %v291
        %vm293 = vcmp.eq.s32.totalorder %v290, %v291
        %v294 = vsub.f32 1.0, %v286
        %v295 = vperm.slane %v294, 1
        %v296 = vsel %vm292, %v295, 0.0
        %v297 = vsel %vm293, %v295, 0.0
        %v298 = vadd.s32 %v287, 1
        %v299 = vperm.slane %v298, 1
        %vm300 = vcmp.eq.s32.totalorder %v289, %v299
        %vm301 = vcmp.eq.s32.totalorder %v290, %v299
        %v302 = vperm.slane %v286, 1
        %v303 = vsel %vm300, %v302, 0.0
        %v304 = vsel %vm301, %v302, 0.0
        %v305 = vadd.f32 %v296, %v303
        %v306 = vadd.f32 %v297, %v304
        %v307 = vperm.slane %v287, 0
        %vm308 = vcmp.eq.s32.totalorder %v289, %v307
        %vm309 = vcmp.eq.s32.totalorder %v290, %v307
        %v310 = vperm.slane %v294, 0
        %v311 = vsel %vm308, %v310, 0.0
        %v312 = vsel %vm309, %v310, 0.0
        %v313 = vperm.slane %v298, 0
        %vm314 = vcmp.eq.s32.totalorder %v289, %v313
        %vm315 = vcmp.eq.s32.totalorder %v290, %v313
        %v316 = vperm.slane %v286, 0
        %v317 = vsel %vm314, %v316, 0.0
        %v318 = vsel %vm315, %v316, 0.0
        %v319 = vadd.f32 %v311, %v317
        %v320 = vadd.f32 %v312, %v318
        %v323 = vrot.slane %v305, 1
        %v324 = vrot.slane %v305, 2
        %v325 = vrot.slane %v305, 3
        %v326 = vrot.slane %v305, 4
        %v327 = vrot.slane %v305, 5
        %v328 = vrot.slane %v305, 6
        %v329 = vrot.slane %v305, 7
        %v330 = vrot.slane %v306, 1
        %v331 = vrot.slane %v306, 2
        %v332 = vrot.slane %v306, 3
        %v333 = vrot.slane %v306, 4
        %v334 = vrot.slane %v306, 5
        %v335 = vrot.slane %v306, 6
        %v336 = vrot.slane %v306, 7
        %v337 = vperm.slane %v305, 0
        %v338 = vperm.slane %v323, 0
        %v339 = vperm.slane %v324, 0
        %v340 = vperm.slane %v325, 0
        %v341 = vperm.slane %v326, 0
        %v342 = vperm.slane %v327, 0
        %v343 = vperm.slane %v328, 0
        %v344 = vperm.slane %v329, 0
        %v345 = vperm.slane %v306, 0
        %v346 = vperm.slane %v330, 0
        %v347 = vperm.slane %v331, 0
        %v348 = vperm.slane %v332, 0
        %v349 = vperm.slane %v333, 0
        %v350 = vperm.slane %v334, 0
        %v351 = vperm.slane %v335, 0
        %v352 = vperm.slane %v336, 0
        %v369 = vmul.f32 %v337, %v319
        %v370 = vmul.f32 %v337, %v320
        %v371 = vmul.f32 %v338, %v319
        %v372 = vmul.f32 %v338, %v320
        %v373 = vmul.f32 %v339, %v319
        %v374 = vmul.f32 %v339, %v320
        %v375 = vmul.f32 %v340, %v319
        %v376 = vmul.f32 %v340, %v320
        %v377 = vmul.f32 %v341, %v319
        %v378 = vmul.f32 %v341, %v320
        %v379 = vmul.f32 %v342, %v319
        %v380 = vmul.f32 %v342, %v320
        %v381 = vmul.f32 %v343, %v319
        %v382 = vmul.f32 %v343, %v320
        %v383 = vmul.f32 %v344, %v319
        %v384 = vmul.f32 %v344, %v320
        %v385 = vmul.f32 %v345, %v319
        %v386 = vmul.f32 %v345, %v320
        %v387 = vmul.f32 %v346, %v319
        %v388 = vmul.f32 %v346, %v320
        %v389 = vmul.f32 %v347, %v319
        %v390 = vmul.f32 %v347, %v320
        %v391 = vmul.f32 %v348, %v319
        %v392 = vmul.f32 %v348, %v320
        %v393 = vmul.f32 %v349, %v319
        %v394 = vmul.f32 %v349, %v320
        %v395 = vmul.f32 %v350, %v319
        %v396 = vmul.f32 %v350, %v320
        %v397 = vmul.f32 %v351, %v319
        %v398 = vmul.f32 %v351, %v320
        %v399 = vmul.f32 %v352, %v319
        %v400 = vmul.f32 %v352, %v320
        %v401 = vperm.slane %v287, 3
        %vm402 = vcmp.eq.s32.totalorder %v289, %v401
        %vm403 = vcmp.eq.s32.totalorder %v290, %v401
        %v404 = vperm.slane %v294, 3
        %v405 = vsel %vm402, %v404, 0.0
        %v406 = vsel %vm403, %v404, 0.0
        %v407 = vperm.slane %v298, 3
        %vm408 = vcmp.eq.s32.totalorder %v289, %v407
        %vm409 = vcmp.eq.s32.totalorder %v290, %v407
        %v410 = vperm.slane %v286, 3
        %v411 = vsel %vm408, %v410, 0.0
        %v412 = vsel %vm409, %v410, 0.0
        %v413 = vadd.f32 %v405, %v411
        %v414 = vadd.f32 %v406, %v412
        %v415 = vperm.slane %v287, 2
        %vm416 = vcmp.eq.s32.totalorder %v289, %v415
        %vm417 = vcmp.eq.s32.totalorder %v290, %v415
        %v418 = vperm.slane %v294, 2
        %v419 = vsel %vm416, %v418, 0.0
        %v420 = vsel %vm417, %v418, 0.0
        %v421 = vperm.slane %v298, 2
        %vm422 = vcmp.eq.s32.totalorder %v289, %v421
        %vm423 = vcmp.eq.s32.totalorder %v290, %v421
        %v424 = vperm.slane %v286, 2
        %v425 = vsel %vm422, %v424, 0.0
        %v426 = vsel %vm423, %v424, 0.0
        %v427 = vadd.f32 %v419, %v425
        %v428 = vadd.f32 %v420, %v426
        %v431 = vrot.slane %v413, 1
        %v432 = vrot.slane %v413, 2
        %v433 = vrot.slane %v413, 3
        %v434 = vrot.slane %v413, 4
        %v435 = vrot.slane %v413, 5
        %v436 = vrot.slane %v413, 6
        %v437 = vrot.slane %v413, 7
        %v438 = vrot.slane %v414, 1
        %v439 = vrot.slane %v414, 2
        %v440 = vrot.slane %v414, 3
        %v441 = vrot.slane %v414, 4
        %v442 = vrot.slane %v414, 5
        %v443 = vrot.slane %v414, 6
        %v444 = vrot.slane %v414, 7
        %v445 = vperm.slane %v413, 0
        %v446 = vperm.slane %v431, 0
        %v447 = vperm.slane %v432, 0
        %v448 = vperm.slane %v433, 0
        %v449 = vperm.slane %v434, 0
        %v450 = vperm.slane %v435, 0
        %v451 = vperm.slane %v436, 0
        %v452 = vperm.slane %v437, 0
        %v453 = vperm.slane %v414, 0
        %v454 = vperm.slane %v438, 0
        %v455 = vperm.slane %v439, 0
        %v456 = vperm.slane %v440, 0
        %v457 = vperm.slane %v441, 0
        %v458 = vperm.slane %v442, 0
        %v459 = vperm.slane %v443, 0
        %v460 = vperm.slane %v444, 0
        %v477 = vmul.f32 %v445, %v427
        %v478 = vmul.f32 %v445, %v428
        %v479 = vmul.f32 %v446, %v427
        %v480 = vmul.f32 %v446, %v428
        %v481 = vmul.f32 %v447, %v427
        %v482 = vmul.f32 %v447, %v428
        %v483 = vmul.f32 %v448, %v427
        %v484 = vmul.f32 %v448, %v428
        %v485 = vmul.f32 %v449, %v427
        %v486 = vmul.f32 %v449, %v428
        %v487 = vmul.f32 %v450, %v427
        %v488 = vmul.f32 %v450, %v428
        %v489 = vmul.f32 %v451, %v427
        %v490 = vmul.f32 %v451, %v428
        %v491 = vmul.f32 %v452, %v427
        %v492 = vmul.f32 %v452, %v428
        %v493 = vmul.f32 %v453, %v427
        %v494 = vmul.f32 %v453, %v428
        %v495 = vmul.f32 %v454, %v427
        %v496 = vmul.f32 %v454, %v428
        %v497 = vmul.f32 %v455, %v427
        %v498 = vmul.f32 %v455, %v428
        %v499 = vmul.f32 %v456, %v427
        %v500 = vmul.f32 %v456, %v428
        %v501 = vmul.f32 %v457, %v427
        %v502 = vmul.f32 %v457, %v428
        %v503 = vmul.f32 %v458, %v427
        %v504 = vmul.f32 %v458, %v428
        %v505 = vmul.f32 %v459, %v427
        %v506 = vmul.f32 %v459, %v428
        %v507 = vmul.f32 %v460, %v427
        %v508 = vmul.f32 %v460, %v428
        %509 = vmatpush.msra.mxu0 %v384
        %510 = vmatpush.msra.mxu0 %v383
        %511 = vmatpush.msra.mxu0 %v382
        %512 = vmatpush.msra.mxu0 %v381
        %513 = vmatpush.msra.mxu0 %v380
        %514 = vmatpush.msra.mxu0 %v379
        %515 = vmatpush.msra.mxu0 %v378
        %516 = vmatpush.msra.mxu0 %v377
        %517 = vmatpush.msra.mxu0 %v376
        %518 = vmatpush.msra.mxu0 %v375
        %519 = vmatpush.msra.mxu0 %v374
        %520 = vmatpush.msra.mxu0 %v373
        %521 = vmatpush.msra.mxu0 %v372
        %522 = vmatpush.msra.mxu0 %v371
        %523 = vmatpush.msra.mxu0 %v370
        %524 = vmatpush.msra.mxu0 %v369
        %525 = vmatmul.f32.gmra.mxu0 %v268
        %v526 = vpop.f32.mrf.mxu0
        %v527 = vadd.f32 0.0, %v526
        %528 = vmatmul.f32.gmra.mxu0 %v270
        %v529 = vpop.f32.mrf.mxu0
        %v530 = vadd.f32 0.0, %v529
        %531 = vmatmul.f32.gmra.mxu0 %v272
        %v532 = vpop.f32.mrf.mxu0
        %v533 = vadd.f32 0.0, %v532
        %534 = vmatmul.f32.gmra.mxu0 %v274
        %v535 = vpop.f32.mrf.mxu0
        %v536 = vadd.f32 0.0, %v535
        %537 = vdwg.mxu0
        %538 = vmatpush.msra.mxu0 %v400
        %539 = vmatpush.msra.mxu0 %v399
        %540 = vmatpush.msra.mxu0 %v398
        %541 = vmatpush.msra.mxu0 %v397
        %542 = vmatpush.msra.mxu0 %v396
        %543 = vmatpush.msra.mxu0 %v395
        %544 = vmatpush.msra.mxu0 %v394
        %545 = vmatpush.msra.mxu0 %v393
        %546 = vmatpush.msra.mxu0 %v392
        %547 = vmatpush.msra.mxu0 %v391
        %548 = vmatpush.msra.mxu0 %v390
        %549 = vmatpush.msra.mxu0 %v389
        %550 = vmatpush.msra.mxu0 %v388
        %551 = vmatpush.msra.mxu0 %v387
        %552 = vmatpush.msra.mxu0 %v386
        %553 = vmatpush.msra.mxu0 %v385
        %554 = vmatmul.f32.gmra.mxu0 %v269
        %v555 = vpop.f32.mrf.mxu0
        %v556 = vadd.f32 %v527, %v555
        %557 = vmatmul.f32.gmra.mxu0 %v271
        %v558 = vpop.f32.mrf.mxu0
        %v559 = vadd.f32 %v530, %v558
        %560 = vmatmul.f32.gmra.mxu0 %v273
        %v561 = vpop.f32.mrf.mxu0
        %v562 = vadd.f32 %v533, %v561
        %563 = vmatmul.f32.gmra.mxu0 %v275
        %v564 = vpop.f32.mrf.mxu0
        %v565 = vadd.f32 %v536, %v564
        %566 = vdwg.mxu0
        %567 = vmatpush.msra.mxu0 %v492
        %568 = vmatpush.msra.mxu0 %v491
        %569 = vmatpush.msra.mxu0 %v490
        %570 = vmatpush.msra.mxu0 %v489
        %571 = vmatpush.msra.mxu0 %v488
        %572 = vmatpush.msra.mxu0 %v487
        %573 = vmatpush.msra.mxu0 %v486
        %574 = vmatpush.msra.mxu0 %v485
        %575 = vmatpush.msra.mxu0 %v484
        %576 = vmatpush.msra.mxu0 %v483
        %577 = vmatpush.msra.mxu0 %v482
        %578 = vmatpush.msra.mxu0 %v481
        %579 = vmatpush.msra.mxu0 %v480
        %580 = vmatpush.msra.mxu0 %v479
        %581 = vmatpush.msra.mxu0 %v478
        %582 = vmatpush.msra.mxu0 %v477
        %583 = vmatmul.f32.gmra.mxu0 %v276
        %v584 = vpop.f32.mrf.mxu0
        %v585 = vadd.f32 0.0, %v584
        %586 = vmatmul.f32.gmra.mxu0 %v278
        %v587 = vpop.f32.mrf.mxu0
        %v588 = vadd.f32 0.0, %v587
        %589 = vmatmul.f32.gmra.mxu0 %v280
        %v590 = vpop.f32.mrf.mxu0
        %v591 = vadd.f32 0.0, %v590
        %592 = vmatmul.f32.gmra.mxu0 %v282
        %v593 = vpop.f32.mrf.mxu0
        %v594 = vadd.f32 0.0, %v593
        %595 = vdwg.mxu0
        %596 = vmatpush.msra.mxu0 %v508
        %597 = vmatpush.msra.mxu0 %v507
        %598 = vmatpush.msra.mxu0 %v506
        %599 = vmatpush.msra.mxu0 %v505
        %600 = vmatpush.msra.mxu0 %v504
        %601 = vmatpush.msra.mxu0 %v503
        %602 = vmatpush.msra.mxu0 %v502
        %603 = vmatpush.msra.mxu0 %v501
        %604 = vmatpush.msra.mxu0 %v500
        %605 = vmatpush.msra.mxu0 %v499
        %606 = vmatpush.msra.mxu0 %v498
        %607 = vmatpush.msra.mxu0 %v497
        %608 = vmatpush.msra.mxu0 %v496
        %609 = vmatpush.msra.mxu0 %v495
        %610 = vmatpush.msra.mxu0 %v494
        %611 = vmatpush.msra.mxu0 %v493
        %612 = vmatmul.f32.gmra.mxu0 %v277
        %v613 = vpop.f32.mrf.mxu0
        %v614 = vadd.f32 %v585, %v613
        %615 = vmatmul.f32.gmra.mxu0 %v279
        %v616 = vpop.f32.mrf.mxu0
        %v617 = vadd.f32 %v588, %v616
        %618 = vmatmul.f32.gmra.mxu0 %v281
        %v619 = vpop.f32.mrf.mxu0
        %v620 = vadd.f32 %v591, %v619
        %621 = vmatmul.f32.gmra.mxu0 %v283
        %v622 = vpop.f32.mrf.mxu0
        %v623 = vadd.f32 %v594, %v622
        %624 = vdwg.mxu0
        %v625 = vmul.f32 %v556, %v556
        %v626 = vmul.f32 %v559, %v559
        %v627 = vmul.f32 %v562, %v562
        %v628 = vmul.f32 %v565, %v565
        %vm629 = vcmask 64512
        %v630 = vsel %vm629, %v625, 0.0
        %v631 = vsel %vm629, %v626, 0.0
        %v632 = vadd.f32 %v630, %v631
        %v633 = vsel %vm629, %v627, 0.0
        %v634 = vadd.f32 %v632, %v633
        %v635 = vsel %vm629, %v628, 0.0
        %v636 = vadd.f32 %v634, %v635
        %v637 = vrot.slane %v636, 4
        %v638 = vadd.f32 %v636, %v637
        %v639 = vrot.slane %v638, 2
        %v640 = vadd.f32 %v638, %v639
        %v641 = vrot.slane %v640, 1
        %v642 = vadd.f32 %v640, %v641
        %v643 = vmax.f32 %v642, 1e-24
        %v644 = vrsqrt.pop %v643
        %v645 = vmul.f32 %v644, %v643
        %v646 = vmul.f32 %v645, %v644
        %v647 = vmul.f32 0.5, %v646
        %v648 = vsub.f32 1.5, %v647
        %v649 = vmul.f32 %v644, %v648
        %vm650 = vweird.f32 %v643
        %vm651 = vweird.f32 %v644
        %vm652 = vmor %vm650, %vm651
        %v653 = vsel %vm652, %v644, %v649
        %v654 = vmul.f32 %v614, %v614
        %v655 = vmul.f32 %v617, %v617
        %v656 = vmul.f32 %v620, %v620
        %v657 = vmul.f32 %v623, %v623
        %v658 = vsel %vm629, %v654, 0.0
        %v659 = vsel %vm629, %v655, 0.0
        %v660 = vadd.f32 %v658, %v659
        %v661 = vsel %vm629, %v656, 0.0
        %v662 = vadd.f32 %v660, %v661
        %v663 = vsel %vm629, %v657, 0.0
        %v664 = vadd.f32 %v662, %v663
        %v665 = vrot.slane %v664, 4
        %v666 = vadd.f32 %v664, %v665
        %v667 = vrot.slane %v666, 2
        %v668 = vadd.f32 %v666, %v667
        %v669 = vrot.slane %v668, 1
        %v670 = vadd.f32 %v668, %v669
        %v671 = vmax.f32 %v670, 1e-24
        %v672 = vrsqrt.pop %v671
        %v673 = vmul.f32 %v672, %v671
        %v674 = vmul.f32 %v673, %v672
        %v675 = vmul.f32 0.5, %v674
        %v676 = vsub.f32 1.5, %v675
        %v677 = vmul.f32 %v672, %v676
        %vm678 = vweird.f32 %v671
        %vm679 = vweird.f32 %v672
        %vm680 = vmor %vm678, %vm679
        %v681 = vsel %vm680, %v672, %v677
        %v682 = vmul.f32 %v556, %v653
        %v683 = vmul.f32 %v559, %v653
        %v684 = vmul.f32 %v562, %v653
        %v685 = vmul.f32 %v565, %v653
        %v686 = vmul.f32 %v614, %v681
        %v687 = vmul.f32 %v617, %v681
        %v688 = vmul.f32 %v620, %v681
        %v689 = vmul.f32 %v623, %v681
        %v691 = vrot.slane %v284, 1
        %v693 = vmul.f32 %v284, %v691
        %v694 = vmul.f32 %v682, %v686
        %v695 = vmul.f32 %v683, %v687
        %v696 = vmul.f32 %v684, %v688
        %v697 = vmul.f32 %v685, %v689
        %v698 = vsel %vm629, %v694, 0.0
        %v699 = vsel %vm629, %v695, 0.0
        %v700 = vadd.f32 %v698, %v699
        %v701 = vsel %vm629, %v696, 0.0
        %v702 = vadd.f32 %v700, %v701
        %v703 = vsel %vm629, %v697, 0.0
        %v704 = vadd.f32 %v702, %v703
        %v705 = vrot.slane %v704, 4
        %v706 = vadd.f32 %v704, %v705
        %v707 = vrot.slane %v706, 2
        %v708 = vadd.f32 %v706, %v707
        %v709 = vrot.slane %v708, 1
        %v710 = vadd.f32 %v708, %v709
        %v711 = vsub.f32 %v682, %v686
        %v712 = vsub.f32 %v683, %v687
        %v713 = vsub.f32 %v684, %v688
        %v714 = vsub.f32 %v685, %v689
        %v715 = vmul.f32 %v711, %v711
        %v716 = vmul.f32 %v712, %v712
        %v717 = vmul.f32 %v713, %v713
        %v718 = vmul.f32 %v714, %v714
        %v719 = vsel %vm629, %v715, 0.0
        %v720 = vsel %vm629, %v716, 0.0
        %v721 = vadd.f32 %v719, %v720
        %v722 = vsel %vm629, %v717, 0.0
        %v723 = vadd.f32 %v721, %v722
        %v724 = vsel %vm629, %v718, 0.0
        %v725 = vadd.f32 %v723, %v724
        %v726 = vrot.slane %v725, 4
        %v727 = vadd.f32 %v725, %v726
        %v728 = vrot.slane %v727, 2
        %v729 = vadd.f32 %v727, %v728
        %v730 = vrot.slane %v729, 1
        %v731 = vadd.f32 %v729, %v730
        %v732 = vsub.f32 1.0, %v710
        %v733 = vadd.f32 %v732, %v731
        %v734 = vmul.f32 %v733, %v693
        %vm735 = vcmask 61444
        %v736 = vsel %vm735, %v734, 0.0
        %737 = vadd.xlane.f32.xlu0 %v736
        %v738 = vpop.xlane.xlu0 %737
        %v739 = vsel %vm735, %v693, 0.0
        %740 = vadd.xlane.f32.xlu0 %v739
        %v741 = vpop.xlane.xlu0 %740
        %vm742 = vcmask 7168
        %v743 = vsel %vm742, %v738, %v741
        %vm744 = vcmask 12292
        %745 = vst.msk [vmem:[%s267 - $0x4] sm:$0x10] %vm744, %v743
        %s746 = sand.u32 %s109, 1
        %s747 = scalar_lea.sflag [#allocation4], %s746
        %s748 = sand.u32 %s109, 1
        %s749 = scalar_lea.vmem [#allocation8], %s748
        // Predicated region
        $region45: #{tpu_custom_call.1} parent=31 // pred_check
          %p750 = pneg %p119
        $region46: #{tpu_custom_call.1} parent=31 // pred_check_branch
          %752 = sbr.rel (%p750) target = $region48
        $region47: #{tpu_custom_call.1} parent=31 // pred_region
          %754 = vsyncadd %s747, 0
          %s755 = scalar_lea.hbm %s3, %s23
          %s757 = sshll.u32 %s749, 4
          %s758 = int_to_ptr.vmem [resolvable:$true] %s757
          %s759 = sshll.u32 %s755, 4
          %s760 = int_to_ptr.hbm [resolvable:$true] %s759
          %762 = dma.vmem_to_hbm [thread:$0]  %s758, 16, %s760, %s747
        $region48: #{tpu_custom_call.1} parent=31 // pred_fallthru
          _
      $region32: #{tpu_custom_call.1} parent=5 // pred_fallthru
        _
      %p763 = scmp.le.s32.totalorder 2, %s18
      // Predicated region
      $region49: #{tpu_custom_call.1} parent=5 // pred_check
        %p764 = pneg %p763
      $region50: #{tpu_custom_call.1} parent=5 // pred_check_branch
        %766 = sbr.rel (%p764) target = $region52
      $region51: #{tpu_custom_call.1} parent=5 // pred_region
        %s767 = ssub.s32 %s18, 2
        // Predicated region
        $region53: #{tpu_custom_call.1} parent=51 // pred_check
          %p768 = pneg %p125
        $region54: #{tpu_custom_call.1} parent=51 // pred_check_branch
          %770 = sbr.rel (%p768) target = $region56
        $region55: #{tpu_custom_call.1} parent=51 // pred_region
          %s771 = sand.u32 %s110, 1
          %s772 = scalar_lea.sflag [#allocation4], %s771
          %s773 = sand.u32 %s110, 1
          %s774 = scalar_lea.vmem [#allocation8], %s773
          %776 = dma.done %s772, 16
        $region56: #{tpu_custom_call.1} parent=51 // pred_fallthru
          _
      $region52: #{tpu_custom_call.1} parent=5 // pred_fallthru
        _
    $region6: #{tpu_custom_call.1} parent=1 // loop_footer
      %s22 = sadd.s32 1, %s18
    $region7: #{tpu_custom_call.1} parent=1 // loop_footer_branch
      %17 = sbr.rel target = $region3
    $region8: #{tpu_custom_call.1} parent=1 // loop_exit
      _
    %777 = vsyncpa [#allocation3], 1
    %s778 = scalar_lea.sflag [#allocation3], 1
    %779 = vsyncpa %s778, 1
    %780 = vsyncpa [#allocation6], 1
    %s781 = scalar_lea.sflag [#allocation6], 1
    %782 = vsyncpa %s781, 1
    %783 = vsyncpa [#allocation4], 1
    %s784 = scalar_lea.sflag [#allocation4], 1
    %785 = vsyncpa %s784, 1

</llo_original>
